<compile_context>
chip_gen: v7x
topology: tpu7x:2x2x1
jax: 0.10.0
libtpu: 0.0.40
codegen_flags: <defaults>
</compile_context>

<pallas_src>
import functools

import jax
import jax.numpy as jnp
from jax.experimental import pallas as pl
from jax.experimental.pallas import tpu as pltpu

# Const.* sizes are not given in the source; fixed deterministically here.
N_PD = 3    # len(Const.primary_disease_states)
N_ND = 3    # len(Const.nodal_disease_states)
N_MOD = 4   # len(Const.modifications)   (state == 1)
N_DLT = 6   # len(Const.dlt1)            (the per-DLT Linear(hidden,1) layers
            #                             are fused into one (hidden, N_DLT) matmul)


def _round_up(n, m):
    return ((n + m - 1) // m) * m


def _softplus(x):
    # numerically stable softplus (matches torch.nn.Softplus, beta=1).
    # (log(1+z) instead of log1p: z = exp(-|x|) <= 1, precision loss only when
    #  the softplus correction is already negligible.)
    return jnp.maximum(x, 0.0) + jnp.log(1.0 + jnp.exp(-jnp.abs(x)))


def _sigmoid(x, approx_recip):
    # numerically stable: never exponentiates a positive argument
    z = jnp.exp(-jnp.abs(x))
    num = jnp.where(x >= 0.0, 1.0, z)
    return num * pl.reciprocal(1.0 + z, approx=approx_recip)


def outcome_kernel(
    xin_ref, mean_ref, invstd_ref,
    w1_ref, b1_ref, w2_ref, b2_ref, wh_ref, bh_ref,
    out_ref,
    *, eps, state, n_pd, n_nd, n_mod, n_dlt, n_pad, trunk_dtype, approx_recip,
):
    xin = xin_ref[...]                                  # (TILE_B, IN) f32
    last_col = xin[:, -1:]                              # (TILE_B, 1) == xin[:, -1]

    # normalize(): (x - mean + eps) * 1/(std + eps)  (reciprocal precomputed)
    x = (xin - mean_ref[...] + eps) * invstd_ref[...]

    # input_dropout / dropout: identity in inference mode
    # TODO(synk): train-mode dropout (p=0.1 / p=0.7) not implemented; eval semantics only.

    # MLP trunk: Linear + ReLU, Linear + ReLU (bf16 or f32 MXU inputs, f32 acc)
    x = x.astype(trunk_dtype)
    h = jnp.dot(x, w1_ref[...], preferred_element_type=jnp.float32) + b1_ref[...]
    h = jnp.maximum(h, 0.0).astype(trunk_dtype)
    h = jnp.dot(h, w2_ref[...], preferred_element_type=jnp.float32) + b2_ref[...]
    h = jnp.maximum(h, 0.0).astype(trunk_dtype)

    # fused heads: pd | nd | mod | dlt packed along lanes, zero-padded to n_pad
    heads = jnp.dot(h, wh_ref[...], preferred_element_type=jnp.float32) + bh_ref[...]

    # segment masks built in-kernel (no captured constants)
    lane = jax.lax.broadcasted_iota(jnp.int32, (1, n_pad), 1)
    n_sm = n_pd + n_nd + n_mod
    n_out = n_sm + n_dlt
    seg_pd = lane < n_pd
    seg_nd = (lane >= n_pd) & (lane < n_pd + n_nd)
    seg_mod = (lane >= n_pd + n_nd) & (lane < n_sm)
    seg_dlt = (lane >= n_sm) & (lane < n_out)

    sp = _softplus(heads)                               # softplus over the full slab

    if state == 1:
        # gated lanes: pd[:, 0:2], nd[:, 0:2], mod[:, 1:] scaled by (xin[:,-1] > 0.5)
        gate = ((lane < 2)
                | ((lane >= n_pd) & (lane < n_pd + 2))
                | ((lane >= n_pd + n_nd + 1) & (lane < n_sm)))
        scale = (last_col > 0.5).astype(jnp.float32)    # (TILE_B, 1)
        sp = sp * jnp.where(gate, scale, 1.0)

    def seg_log_softmax(v, seg):
        m = jnp.max(jnp.where(seg, v, -jnp.inf), axis=-1, keepdims=True)
        s = jnp.sum(jnp.where(seg, jnp.exp(v - m), 0.0), axis=-1, keepdims=True)
        return (v - m) - jnp.log(s)

    ls_pd = seg_log_softmax(sp, seg_pd)
    ls_nd = seg_log_softmax(sp, seg_nd)
    ls_mod = seg_log_softmax(sp, seg_mod)
    dlt = _sigmoid(heads, approx_recip) * last_col

    out = jnp.where(seg_pd, ls_pd,
          jnp.where(seg_nd, ls_nd,
          jnp.where(seg_mod, ls_mod,
          jnp.where(seg_dlt, dlt, 0.0))))

    # single lane-dense output tile (TILE_B, n_pad); wrapper slices [:, :n_out]
    out_ref[...] = out


def init_linear(key, fan_in, fan_out):
    """PyTorch nn.Linear default init: U(-1/sqrt(fan_in), 1/sqrt(fan_in)).
    Weight returned already transposed to (fan_in, fan_out); bias as (1, fan_out)."""
    kw, kb = jax.random.split(key)
    bound = 1.0 / (fan_in ** 0.5)
    w = jax.random.uniform(kw, (fan_in, fan_out), jnp.float32, -bound, bound)
    b = jax.random.uniform(kb, (1, fan_out), jnp.float32, -bound, bound)
    return w, b


def prepare_params(params, *, trunk_dtype=jnp.bfloat16, pad_to=128, head_pad_to=128):
    """Fuse the 4 heads into one matmul, zero-pad hidden dims to multiples of 128
    and the fused head width to a lane-dense multiple of 128.

    Input: (w1, b1, w2, b2, wpd, bpd, wnd, bnd, wmod, bmod, wdlt, bdlt) — all f32,
    weights already (in, out). Output: packed params for the kernel + head sizes.
    Zero padding is numerically exact through ReLU and the heads."""
    (w1, b1, w2, b2, wpd, bpd, wnd, bnd, wmod, bmod, wdlt, bdlt) = params
    head_sizes = (wpd.shape[1], wnd.shape[1], wmod.shape[1], wdlt.shape[1])
    n_out = sum(head_sizes)

    in_size, h1 = w1.shape
    _, h2 = w2.shape
    h1p = _round_up(h1, pad_to)
    h2p = _round_up(h2, pad_to)
    n_pad = _round_up(max(n_out, head_pad_to), 128)     # lane-dense output slab

    w1p = jnp.zeros((in_size, h1p), jnp.float32).at[:, :h1].set(w1)
    b1p = jnp.zeros((1, h1p), jnp.float32).at[:, :h1].set(b1)
    w2p = jnp.zeros((h1p, h2p), jnp.float32).at[:h1, :h2].set(w2)
    b2p = jnp.zeros((1, h2p), jnp.float32).at[:, :h2].set(b2)

    wh = jnp.concatenate([wpd, wnd, wmod, wdlt], axis=1)           # (h2, 16)
    bh = jnp.concatenate([bpd, bnd, bmod, bdlt], axis=1)           # (1, 16)
    whp = jnp.zeros((h2p, n_pad), jnp.float32).at[:h2, :n_out].set(wh)
    bhp = jnp.zeros((1, n_pad), jnp.float32).at[:, :n_out].set(bh)

    w1p = w1p.astype(trunk_dtype)
    w2p = w2p.astype(trunk_dtype)
    whp = whp.astype(trunk_dtype)
    return (w1p, b1p, w2p, b2p, whp, bhp), head_sizes


def outcome_simulator_forward(xin, prepared, head_sizes, *, eps=0.01, state=1,
                              tile_b=1024, mean=None, std=None, approx_recip=False):
    """OutcomeSimulator.forward as one batch-tiled fused Pallas kernel."""
    (w1, b1, w2, b2, wh, bh) = prepared
    n_pd, n_nd, n_mod, n_dlt = head_sizes
    n_out = n_pd + n_nd + n_mod + n_dlt
    n_pad = wh.shape[1]                                 # lane-padded head width (128)
    B, in_size = xin.shape
    trunk_dtype = w1.dtype

    # normalizer buffers (input_mean / input_std); defaults match the module
    if mean is None:
        mean_arr = jnp.zeros((1, in_size), jnp.float32)
    else:
        mean_arr = jnp.broadcast_to(jnp.asarray(mean, jnp.float32), (1, in_size))
    if std is None:
        std_arr = jnp.ones((1, in_size), jnp.float32)
    else:
        std_arr = jnp.broadcast_to(jnp.asarray(std, jnp.float32), (1, in_size))
    inv_std = 1.0 / (std_arr + eps)   # precomputed; kernel only multiplies

    # batch tiling: sublane-aligned tile, capped so the grid has >=2 steps when
    # there is enough work (shards across both TensorCores on v7x).
    tile_b = max(8, (int(tile_b) // 8) * 8)
    b_ceil8 = _round_up(max(B, 1), 8)
    tile_b = min(tile_b, b_ceil8)
    if b_ceil8 >= 16:
        tile_b = min(tile_b, max(8, ((b_ceil8 // 2) // 8) * 8))
    Bp = _round_up(B, tile_b)
    xin_p = xin if Bp == B else jnp.zeros((Bp, in_size), xin.dtype).at[:B].set(xin)
    grid = (Bp // tile_b,)

    kernel = functools.partial(
        outcome_kernel, eps=float(eps), state=int(state),
        n_pd=n_pd, n_nd=n_nd, n_mod=n_mod, n_dlt=n_dlt, n_pad=n_pad,
        trunk_dtype=trunk_dtype, approx_recip=approx_recip)

    const_map = lambda i: (0, 0)
    in_specs = [
        pl.BlockSpec((tile_b, in_size), lambda i: (i, 0)),   # xin: tiled over batch
        pl.BlockSpec(mean_arr.shape, const_map),             # normalizer buffers and
        pl.BlockSpec(inv_std.shape, const_map),              # weights: resident in VMEM
        pl.BlockSpec(w1.shape, const_map),
        pl.BlockSpec(b1.shape, const_map),
        pl.BlockSpec(w2.shape, const_map),
        pl.BlockSpec(b2.shape, const_map),
        pl.BlockSpec(wh.shape, const_map),
        pl.BlockSpec(bh.shape, const_map),
    ]
    out_spec = pl.BlockSpec((tile_b, n_pad), lambda i: (i, 0))

    h1 = w1.shape[1]
    h2 = w2.shape[1]
    param_bytes = sum(int(p.size) * p.dtype.itemsize for p in (w1, b1, w2, b2, wh, bh))
    cost = pl.CostEstimate(
        flops=2 * Bp * (in_size * h1 + h1 * h2 + h2 * n_pad),
        bytes_accessed=int(xin_p.size) * 4 + Bp * n_pad * 4 + param_bytes,
        transcendentals=Bp * (2 * n_pad + 2 * 3 + 2 * n_dlt),
    )

    packed = pl.pallas_call(
        kernel,
        out_shape=jax.ShapeDtypeStruct((Bp, n_pad), jnp.float32),
        grid=grid,
        in_specs=in_specs,
        out_specs=out_spec,
        compiler_params=pltpu.CompilerParams(
            dimension_semantics=("parallel",),
            vmem_limit_bytes=48 * 1024 * 1024,   # <= 48 MiB: safe on v7x (64 MiB VMEM)
        ),
        cost_estimate=cost,
    )(xin_p, mean_arr, inv_std, w1, b1, w2, b2, wh, bh)

    packed = packed[:B, :n_out]
    x_pd = packed[:, :n_pd]
    x_nd = packed[:, n_pd:n_pd + n_nd]
    x_mod = packed[:, n_pd + n_nd:n_pd + n_nd + n_mod]
    x_dlt = packed[:, n_pd + n_nd + n_mod:]
    return x_pd, x_nd, x_mod, x_dlt


def reference_forward(xin, params, *, eps=0.01, state=1):
    """Pure-JAX f32 reference mirroring the PyTorch forward (eval mode)."""
    (w1, b1, w2, b2, wpd, bpd, wnd, bnd, wmod, bmod, wdlt, bdlt) = params
    hp = "highest"
    x = (xin - 0.0 + eps) / (1.0 + eps)
    h = jnp.maximum(jnp.dot(x, w1, precision=hp) + b1, 0.0)
    h = jnp.maximum(jnp.dot(h, w2, precision=hp) + b2, 0.0)
    x_pd = jax.nn.softplus(jnp.dot(h, wpd, precision=hp) + bpd)
    x_nd = jax.nn.softplus(jnp.dot(h, wnd, precision=hp) + bnd)
    x_mod = jax.nn.softplus(jnp.dot(h, wmod, precision=hp) + bmod)
    x_dlt = jnp.dot(h, wdlt, precision=hp) + bdlt
    last = xin[:, -1:]
    if state == 1:
        scale = (last > 0.5).astype(jnp.float32)
        x_pd = x_pd.at[:, 0:2].set(x_pd[:, 0:2] * scale)
        x_nd = x_nd.at[:, 0:2].set(x_nd[:, 0:2] * scale)
        x_mod = x_mod.at[:, 1:].set(x_mod[:, 1:] * scale)
    x_pd = jax.nn.log_softmax(x_pd, axis=1)
    x_nd = jax.nn.log_softmax(x_nd, axis=1)
    x_mod = jax.nn.log_softmax(x_mod, axis=1)
    x_dlt = jax.nn.sigmoid(x_dlt) * last
    return x_pd, x_nd, x_mod, x_dlt


if __name__ == "__main__":
    # small shapes consistent with the module's forward
    B = 8
    INPUT_SIZE = 32
    HIDDEN = [64, 64]   # stand-in for default [500, 500]; padded to 128 internally
    STATE = 1

    root = jax.random.PRNGKey(0)
    kx, k1, k2, kpd, knd, kmod, kdlt = jax.random.split(root, 7)

    xin = jax.random.normal(kx, (B, INPUT_SIZE), jnp.float32)

    w1, b1 = init_linear(k1, INPUT_SIZE, HIDDEN[0])
    w2, b2 = init_linear(k2, HIDDEN[0], HIDDEN[1])
    wpd, bpd = init_linear(kpd, HIDDEN[1], N_PD)
    wnd, bnd = init_linear(knd, HIDDEN[1], N_ND)
    wmod, bmod = init_linear(kmod, HIDDEN[1], N_MOD)
    wdlt, bdlt = init_linear(kdlt, HIDDEN[1], N_DLT)  # fused stack of Linear(hidden, 1)

    raw_params = (w1, b1, w2, b2, wpd, bpd, wnd, bnd, wmod, bmod, wdlt, bdlt)

    refs = reference_forward(xin, raw_params, eps=0.01, state=STATE)

    # --- f32 trunk: parity validation (exact sigmoid / exact reciprocal) ---
    prep_f32, head_sizes = prepare_params(raw_params, trunk_dtype=jnp.float32)
    outs_f32 = outcome_simulator_forward(
        xin, prep_f32, head_sizes, eps=0.01, state=STATE,
        tile_b=1024, approx_recip=False)
    outs_f32 = jax.block_until_ready(outs_f32)
    for o, r in zip(outs_f32, refs):
        assert o.shape == r.shape and o.dtype == r.dtype
        assert jnp.allclose(o, r, atol=5e-3, rtol=5e-3), "f32 mismatch vs reference"

    # --- bf16 trunk (production config: native MXU inputs, f32 accumulation) ---
    prep_bf16, _ = prepare_params(raw_params, trunk_dtype=jnp.bfloat16)
    outs_bf16 = outcome_simulator_forward(
        xin, prep_bf16, head_sizes, eps=0.01, state=STATE,
        tile_b=1024, approx_recip=True)
    outs_bf16 = jax.block_until_ready(outs_bf16)
    for o, r in zip(outs_bf16, refs):
        assert o.shape == r.shape and o.dtype == r.dtype
        assert jnp.allclose(o, r, atol=5e-2, rtol=5e-2), "bf16 mismatch vs reference"

    print("KERNEL_OK")
</pallas_src>

<mosaic_0001>
module attributes {stable_mosaic.version = 11 : i64} {
  func.func @outcome_kernel(%arg0: i32, %arg1: memref<8x32xf32, #tpu.memory_space<vmem>>, %arg2: memref<1x32xf32, #tpu.memory_space<vmem>>, %arg3: memref<1x32xf32, #tpu.memory_space<vmem>>, %arg4: memref<32x128xf32, #tpu.memory_space<vmem>>, %arg5: memref<1x128xf32, #tpu.memory_space<vmem>>, %arg6: memref<128x128xf32, #tpu.memory_space<vmem>>, %arg7: memref<1x128xf32, #tpu.memory_space<vmem>>, %arg8: memref<128x128xf32, #tpu.memory_space<vmem>>, %arg9: memref<1x128xf32, #tpu.memory_space<vmem>>, %arg10: memref<8x128xf32, #tpu.memory_space<vmem>>) attributes {dimension_semantics = [#tpu.dimension_semantics<parallel>], iteration_bounds = array<i64: 1>, scalar_prefetch = 0 : i64, scratch_operands = 0 : i64, tpu.core_type = #tpu.core_type<tc>, window_params = [{transform_indices = @transform_0, window_bounds = array<i64: 8, 32>}, {pipeline_mode = #tpu.pipeline_mode<synchronous>, transform_indices = @transform_1, window_bounds = array<i64: 1, 32>}, {pipeline_mode = #tpu.pipeline_mode<synchronous>, transform_indices = @transform_2, window_bounds = array<i64: 1, 32>}, {pipeline_mode = #tpu.pipeline_mode<synchronous>, transform_indices = @transform_3, window_bounds = array<i64: 32, 128>}, {pipeline_mode = #tpu.pipeline_mode<synchronous>, transform_indices = @transform_4, window_bounds = array<i64: 1, 128>}, {pipeline_mode = #tpu.pipeline_mode<synchronous>, transform_indices = @transform_5, window_bounds = array<i64: 128, 128>}, {pipeline_mode = #tpu.pipeline_mode<synchronous>, transform_indices = @transform_6, window_bounds = array<i64: 1, 128>}, {pipeline_mode = #tpu.pipeline_mode<synchronous>, transform_indices = @transform_7, window_bounds = array<i64: 128, 128>}, {pipeline_mode = #tpu.pipeline_mode<synchronous>, transform_indices = @transform_8, window_bounds = array<i64: 1, 128>}, {transform_indices = @transform_9, window_bounds = array<i64: 8, 128>}]} {
    %c0 = arith.constant 0 : index
    %c0_0 = arith.constant 0 : index
    %0 = vector.load %arg1[%c0, %c0_0] : memref<8x32xf32, #tpu.memory_space<vmem>>, vector<8x32xf32>
    %1 = vector.extract_strided_slice %0 {offsets = [0, 31], sizes = [8, 1], strides = [1, 1]} : vector<8x32xf32> to vector<8x1xf32>
    %c0_1 = arith.constant 0 : index
    %c0_2 = arith.constant 0 : index
    %2 = vector.load %arg2[%c0_1, %c0_2] : memref<1x32xf32, #tpu.memory_space<vmem>>, vector<1x32xf32>
    %3 = vector.broadcast %2 : vector<1x32xf32> to vector<8x32xf32>
    %4 = arith.subf %0, %3 : vector<8x32xf32>
    %cst = arith.constant 0.00999999977 : f32
    %5 = vector.broadcast %cst : f32 to vector<8x32xf32>
    %6 = arith.addf %4, %5 : vector<8x32xf32>
    %c0_3 = arith.constant 0 : index
    %c0_4 = arith.constant 0 : index
    %7 = vector.load %arg3[%c0_3, %c0_4] : memref<1x32xf32, #tpu.memory_space<vmem>>, vector<1x32xf32>
    %8 = vector.broadcast %7 : vector<1x32xf32> to vector<8x32xf32>
    %9 = arith.mulf %6, %8 : vector<8x32xf32>
    %c0_5 = arith.constant 0 : index
    %c0_6 = arith.constant 0 : index
    %10 = vector.load %arg4[%c0_5, %c0_6] : memref<32x128xf32, #tpu.memory_space<vmem>>, vector<32x128xf32>
    %cst_7 = arith.constant dense<0.000000e+00> : vector<8x128xf32>
    %11 = tpu.matmul %9, %10, %cst_7 {dimension_numbers = #tpu.dot_dimension_numbers<[1], [0], [0], [1], [0, 0, 1, 1], [], []>} : vector<8x32xf32>, vector<32x128xf32>, vector<8x128xf32> -> vector<8x128xf32>
    %c0_8 = arith.constant 0 : index
    %c0_9 = arith.constant 0 : index
    %12 = vector.load %arg5[%c0_8, %c0_9] : memref<1x128xf32, #tpu.memory_space<vmem>>, vector<1x128xf32>
    %13 = vector.broadcast %12 : vector<1x128xf32> to vector<8x128xf32>
    %14 = arith.addf %11, %13 : vector<8x128xf32>
    %cst_10 = arith.constant 0.000000e+00 : f32
    %15 = vector.broadcast %cst_10 : f32 to vector<8x128xf32>
    %16 = arith.maximumf %14, %15 : vector<8x128xf32>
    %c0_11 = arith.constant 0 : index
    %c0_12 = arith.constant 0 : index
    %17 = vector.load %arg6[%c0_11, %c0_12] : memref<128x128xf32, #tpu.memory_space<vmem>>, vector<128x128xf32>
    %cst_13 = arith.constant dense<0.000000e+00> : vector<8x128xf32>
    %18 = tpu.matmul %16, %17, %cst_13 {dimension_numbers = #tpu.dot_dimension_numbers<[1], [0], [0], [1], [0, 0, 1, 1], [], []>} : vector<8x128xf32>, vector<128x128xf32>, vector<8x128xf32> -> vector<8x128xf32>
    %c0_14 = arith.constant 0 : index
    %c0_15 = arith.constant 0 : index
    %19 = vector.load %arg7[%c0_14, %c0_15] : memref<1x128xf32, #tpu.memory_space<vmem>>, vector<1x128xf32>
    %20 = vector.broadcast %19 : vector<1x128xf32> to vector<8x128xf32>
    %21 = arith.addf %18, %20 : vector<8x128xf32>
    %cst_16 = arith.constant 0.000000e+00 : f32
    %22 = vector.broadcast %cst_16 : f32 to vector<8x128xf32>
    %23 = arith.maximumf %21, %22 : vector<8x128xf32>
    %c0_17 = arith.constant 0 : index
    %c0_18 = arith.constant 0 : index
    %24 = vector.load %arg8[%c0_17, %c0_18] : memref<128x128xf32, #tpu.memory_space<vmem>>, vector<128x128xf32>
    %cst_19 = arith.constant dense<0.000000e+00> : vector<8x128xf32>
    %25 = tpu.matmul %23, %24, %cst_19 {dimension_numbers = #tpu.dot_dimension_numbers<[1], [0], [0], [1], [0, 0, 1, 1], [], []>} : vector<8x128xf32>, vector<128x128xf32>, vector<8x128xf32> -> vector<8x128xf32>
    %c0_20 = arith.constant 0 : index
    %c0_21 = arith.constant 0 : index
    %26 = vector.load %arg9[%c0_20, %c0_21] : memref<1x128xf32, #tpu.memory_space<vmem>>, vector<1x128xf32>
    %27 = vector.broadcast %26 : vector<1x128xf32> to vector<8x128xf32>
    %28 = arith.addf %25, %27 : vector<8x128xf32>
    %29 = tpu.iota {dimensions = array<i32: 1>} : vector<1x128xi32>
    %c3_i32 = arith.constant 3 : i32
    %30 = vector.broadcast %c3_i32 : i32 to vector<1x128xi32>
    %31 = arith.cmpi slt, %29, %30 : vector<1x128xi32>
    %c3_i32_22 = arith.constant 3 : i32
    %32 = vector.broadcast %c3_i32_22 : i32 to vector<1x128xi32>
    %33 = arith.cmpi sge, %29, %32 : vector<1x128xi32>
    %c6_i32 = arith.constant 6 : i32
    %34 = vector.broadcast %c6_i32 : i32 to vector<1x128xi32>
    %35 = arith.cmpi slt, %29, %34 : vector<1x128xi32>
    %36 = arith.andi %33, %35 : vector<1x128xi1>
    %c6_i32_23 = arith.constant 6 : i32
    %37 = vector.broadcast %c6_i32_23 : i32 to vector<1x128xi32>
    %38 = arith.cmpi sge, %29, %37 : vector<1x128xi32>
    %c10_i32 = arith.constant 10 : i32
    %39 = vector.broadcast %c10_i32 : i32 to vector<1x128xi32>
    %40 = arith.cmpi slt, %29, %39 : vector<1x128xi32>
    %41 = arith.andi %38, %40 : vector<1x128xi1>
    %c10_i32_24 = arith.constant 10 : i32
    %42 = vector.broadcast %c10_i32_24 : i32 to vector<1x128xi32>
    %43 = arith.cmpi sge, %29, %42 : vector<1x128xi32>
    %c16_i32 = arith.constant 16 : i32
    %44 = vector.broadcast %c16_i32 : i32 to vector<1x128xi32>
    %45 = arith.cmpi slt, %29, %44 : vector<1x128xi32>
    %46 = arith.andi %43, %45 : vector<1x128xi1>
    %cst_25 = arith.constant 0.000000e+00 : f32
    %47 = vector.broadcast %cst_25 : f32 to vector<8x128xf32>
    %48 = arith.maximumf %28, %47 : vector<8x128xf32>
    %49 = math.absf %28 : vector<8x128xf32>
    %cst_26 = arith.constant 0.000000e+00 : f32
    %50 = vector.broadcast %cst_26 : f32 to vector<8x128xf32>
    %51 = arith.subf %50, %49 : vector<8x128xf32>
    %52 = math.exp %51 : vector<8x128xf32>
    %cst_27 = arith.constant 1.000000e+00 : f32
    %53 = vector.broadcast %cst_27 : f32 to vector<8x128xf32>
    %54 = arith.addf %53, %52 : vector<8x128xf32>
    %55 = math.log %54 : vector<8x128xf32>
    %56 = arith.addf %48, %55 : vector<8x128xf32>
    %c2_i32 = arith.constant 2 : i32
    %57 = vector.broadcast %c2_i32 : i32 to vector<1x128xi32>
    %58 = arith.cmpi slt, %29, %57 : vector<1x128xi32>
    %c3_i32_28 = arith.constant 3 : i32
    %59 = vector.broadcast %c3_i32_28 : i32 to vector<1x128xi32>
    %60 = arith.cmpi sge, %29, %59 : vector<1x128xi32>
    %c5_i32 = arith.constant 5 : i32
    %61 = vector.broadcast %c5_i32 : i32 to vector<1x128xi32>
    %62 = arith.cmpi slt, %29, %61 : vector<1x128xi32>
    %63 = arith.andi %60, %62 : vector<1x128xi1>
    %64 = arith.ori %58, %63 : vector<1x128xi1>
    %c7_i32 = arith.constant 7 : i32
    %65 = vector.broadcast %c7_i32 : i32 to vector<1x128xi32>
    %66 = arith.cmpi sge, %29, %65 : vector<1x128xi32>
    %c10_i32_29 = arith.constant 10 : i32
    %67 = vector.broadcast %c10_i32_29 : i32 to vector<1x128xi32>
    %68 = arith.cmpi slt, %29, %67 : vector<1x128xi32>
    %69 = arith.andi %66, %68 : vector<1x128xi1>
    %70 = arith.ori %64, %69 : vector<1x128xi1>
    %cst_30 = arith.constant 5.000000e-01 : f32
    %71 = vector.broadcast %cst_30 : f32 to vector<8x1xf32>
    %72 = arith.cmpf ogt, %1, %71 : vector<8x1xf32>
    %73 = arith.extui %72 : vector<8x1xi1> to vector<8x1xi32>
    %74 = arith.sitofp %73 : vector<8x1xi32> to vector<8x1xf32>
    %cst_31 = arith.constant 1.000000e+00 : f32
    %75 = vector.shape_cast %70 : vector<1x128xi1> to vector<1x128xi1>
    %76 = vector.broadcast %75 : vector<1x128xi1> to vector<8x128xi1>
    %77 = vector.shape_cast %74 : vector<8x1xf32> to vector<8x1xf32>
    %78 = vector.broadcast %77 : vector<8x1xf32> to vector<8x128xf32>
    %79 = vector.broadcast %cst_31 : f32 to vector<8x128xf32>
    %80 = arith.select %76, %78, %79 : vector<8x128xi1>, vector<8x128xf32>
    %81 = arith.mulf %56, %80 : vector<8x128xf32>
    %cst_32 = arith.constant 0xFF800000 : f32
    %82 = vector.shape_cast %31 : vector<1x128xi1> to vector<1x128xi1>
    %83 = vector.broadcast %82 : vector<1x128xi1> to vector<8x128xi1>
    %84 = vector.broadcast %cst_32 : f32 to vector<8x128xf32>
    %85 = arith.select %83, %81, %84 : vector<8x128xi1>, vector<8x128xf32>
    %cst_33 = arith.constant dense<0xFF800000> : vector<8xf32>
    %86 = vector.multi_reduction <maximumf>, %85, %cst_33 [1] : vector<8x128xf32> to vector<8xf32>
    %87 = vector.shape_cast %86 : vector<8xf32> to vector<8x1xf32>
    %88 = vector.broadcast %87 : vector<8x1xf32> to vector<8x128xf32>
    %89 = arith.subf %81, %88 : vector<8x128xf32>
    %90 = math.exp %89 : vector<8x128xf32>
    %cst_34 = arith.constant 0.000000e+00 : f32
    %91 = vector.shape_cast %31 : vector<1x128xi1> to vector<1x128xi1>
    %92 = vector.broadcast %91 : vector<1x128xi1> to vector<8x128xi1>
    %93 = vector.broadcast %cst_34 : f32 to vector<8x128xf32>
    %94 = arith.select %92, %90, %93 : vector<8x128xi1>, vector<8x128xf32>
    %cst_35 = arith.constant dense<0.000000e+00> : vector<8xf32>
    %95 = vector.multi_reduction <add>, %94, %cst_35 [1] : vector<8x128xf32> to vector<8xf32>
    %96 = vector.shape_cast %95 : vector<8xf32> to vector<8x1xf32>
    %97 = vector.broadcast %87 : vector<8x1xf32> to vector<8x128xf32>
    %98 = arith.subf %81, %97 : vector<8x128xf32>
    %99 = math.log %96 : vector<8x1xf32>
    %100 = vector.broadcast %99 : vector<8x1xf32> to vector<8x128xf32>
    %101 = arith.subf %98, %100 : vector<8x128xf32>
    %cst_36 = arith.constant 0xFF800000 : f32
    %102 = vector.shape_cast %36 : vector<1x128xi1> to vector<1x128xi1>
    %103 = vector.broadcast %102 : vector<1x128xi1> to vector<8x128xi1>
    %104 = vector.broadcast %cst_36 : f32 to vector<8x128xf32>
    %105 = arith.select %103, %81, %104 : vector<8x128xi1>, vector<8x128xf32>
    %cst_37 = arith.constant dense<0xFF800000> : vector<8xf32>
    %106 = vector.multi_reduction <maximumf>, %105, %cst_37 [1] : vector<8x128xf32> to vector<8xf32>
    %107 = vector.shape_cast %106 : vector<8xf32> to vector<8x1xf32>
    %108 = vector.broadcast %107 : vector<8x1xf32> to vector<8x128xf32>
    %109 = arith.subf %81, %108 : vector<8x128xf32>
    %110 = math.exp %109 : vector<8x128xf32>
    %cst_38 = arith.constant 0.000000e+00 : f32
    %111 = vector.shape_cast %36 : vector<1x128xi1> to vector<1x128xi1>
    %112 = vector.broadcast %111 : vector<1x128xi1> to vector<8x128xi1>
    %113 = vector.broadcast %cst_38 : f32 to vector<8x128xf32>
    %114 = arith.select %112, %110, %113 : vector<8x128xi1>, vector<8x128xf32>
    %cst_39 = arith.constant dense<0.000000e+00> : vector<8xf32>
    %115 = vector.multi_reduction <add>, %114, %cst_39 [1] : vector<8x128xf32> to vector<8xf32>
    %116 = vector.shape_cast %115 : vector<8xf32> to vector<8x1xf32>
    %117 = vector.broadcast %107 : vector<8x1xf32> to vector<8x128xf32>
    %118 = arith.subf %81, %117 : vector<8x128xf32>
    %119 = math.log %116 : vector<8x1xf32>
    %120 = vector.broadcast %119 : vector<8x1xf32> to vector<8x128xf32>
    %121 = arith.subf %118, %120 : vector<8x128xf32>
    %cst_40 = arith.constant 0xFF800000 : f32
    %122 = vector.shape_cast %41 : vector<1x128xi1> to vector<1x128xi1>
    %123 = vector.broadcast %122 : vector<1x128xi1> to vector<8x128xi1>
    %124 = vector.broadcast %cst_40 : f32 to vector<8x128xf32>
    %125 = arith.select %123, %81, %124 : vector<8x128xi1>, vector<8x128xf32>
    %cst_41 = arith.constant dense<0xFF800000> : vector<8xf32>
    %126 = vector.multi_reduction <maximumf>, %125, %cst_41 [1] : vector<8x128xf32> to vector<8xf32>
    %127 = vector.shape_cast %126 : vector<8xf32> to vector<8x1xf32>
    %128 = vector.broadcast %127 : vector<8x1xf32> to vector<8x128xf32>
    %129 = arith.subf %81, %128 : vector<8x128xf32>
    %130 = math.exp %129 : vector<8x128xf32>
    %cst_42 = arith.constant 0.000000e+00 : f32
    %131 = vector.shape_cast %41 : vector<1x128xi1> to vector<1x128xi1>
    %132 = vector.broadcast %131 : vector<1x128xi1> to vector<8x128xi1>
    %133 = vector.broadcast %cst_42 : f32 to vector<8x128xf32>
    %134 = arith.select %132, %130, %133 : vector<8x128xi1>, vector<8x128xf32>
    %cst_43 = arith.constant dense<0.000000e+00> : vector<8xf32>
    %135 = vector.multi_reduction <add>, %134, %cst_43 [1] : vector<8x128xf32> to vector<8xf32>
    %136 = vector.shape_cast %135 : vector<8xf32> to vector<8x1xf32>
    %137 = vector.broadcast %127 : vector<8x1xf32> to vector<8x128xf32>
    %138 = arith.subf %81, %137 : vector<8x128xf32>
    %139 = math.log %136 : vector<8x1xf32>
    %140 = vector.broadcast %139 : vector<8x1xf32> to vector<8x128xf32>
    %141 = arith.subf %138, %140 : vector<8x128xf32>
    %142 = math.absf %28 : vector<8x128xf32>
    %cst_44 = arith.constant 0.000000e+00 : f32
    %143 = vector.broadcast %cst_44 : f32 to vector<8x128xf32>
    %144 = arith.subf %143, %142 : vector<8x128xf32>
    %145 = math.exp %144 : vector<8x128xf32>
    %cst_45 = arith.constant 0.000000e+00 : f32
    %146 = vector.broadcast %cst_45 : f32 to vector<8x128xf32>
    %147 = arith.cmpf oge, %28, %146 : vector<8x128xf32>
    %cst_46 = arith.constant 1.000000e+00 : f32
    %148 = vector.broadcast %cst_46 : f32 to vector<8x128xf32>
    %149 = arith.select %147, %148, %145 : vector<8x128xi1>, vector<8x128xf32>
    %cst_47 = arith.constant 1.000000e+00 : f32
    %150 = vector.broadcast %cst_47 : f32 to vector<8x128xf32>
    %151 = arith.addf %150, %145 : vector<8x128xf32>
    %152 = tpu.reciprocal %151 : vector<8x128xf32> -> vector<8x128xf32>
    %153 = arith.mulf %149, %152 : vector<8x128xf32>
    %154 = vector.broadcast %1 : vector<8x1xf32> to vector<8x128xf32>
    %155 = arith.mulf %153, %154 : vector<8x128xf32>
    %cst_48 = arith.constant 0.000000e+00 : f32
    %156 = vector.shape_cast %46 : vector<1x128xi1> to vector<1x128xi1>
    %157 = vector.broadcast %156 : vector<1x128xi1> to vector<8x128xi1>
    %158 = vector.broadcast %cst_48 : f32 to vector<8x128xf32>
    %159 = arith.select %157, %155, %158 : vector<8x128xi1>, vector<8x128xf32>
    %160 = vector.shape_cast %41 : vector<1x128xi1> to vector<1x128xi1>
    %161 = vector.broadcast %160 : vector<1x128xi1> to vector<8x128xi1>
    %162 = arith.select %161, %141, %159 : vector<8x128xi1>, vector<8x128xf32>
    %163 = vector.shape_cast %36 : vector<1x128xi1> to vector<1x128xi1>
    %164 = vector.broadcast %163 : vector<1x128xi1> to vector<8x128xi1>
    %165 = arith.select %164, %121, %162 : vector<8x128xi1>, vector<8x128xf32>
    %166 = vector.shape_cast %31 : vector<1x128xi1> to vector<1x128xi1>
    %167 = vector.broadcast %166 : vector<1x128xi1> to vector<8x128xi1>
    %168 = arith.select %167, %101, %165 : vector<8x128xi1>, vector<8x128xf32>
    %c0_49 = arith.constant 0 : index
    %c0_50 = arith.constant 0 : index
    %169 = vector.load %arg10[%c0_49, %c0_50] : memref<8x128xf32, #tpu.memory_space<vmem>>, vector<8x128xf32>
    tpu.vector_store %arg10[%c0_49, %c0_50], %168 {strides = array<i32>} : memref<8x128xf32, #tpu.memory_space<vmem>>, vector<8x128xf32>,
    return
  }
  func.func @transform_0(%arg0: i32) -> (i32, i32) {
    %c0_i32 = arith.constant 0 : i32
    %c0_i32_0 = arith.constant 0 : i32
    return %arg0, %c0_i32 : i32, i32
  }
  func.func @transform_1(%arg0: i32) -> (i32, i32) {
    %c0_i32 = arith.constant 0 : i32
    %c0_i32_0 = arith.constant 0 : i32
    %c0_i32_1 = arith.constant 0 : i32
    return %c0_i32, %c0_i32_0 : i32, i32
  }
  func.func @transform_2(%arg0: i32) -> (i32, i32) {
    %c0_i32 = arith.constant 0 : i32
    %c0_i32_0 = arith.constant 0 : i32
    %c0_i32_1 = arith.constant 0 : i32
    return %c0_i32, %c0_i32_0 : i32, i32
  }
  func.func @transform_3(%arg0: i32) -> (i32, i32) {
    %c0_i32 = arith.constant 0 : i32
    %c0_i32_0 = arith.constant 0 : i32
    %c0_i32_1 = arith.constant 0 : i32
    return %c0_i32, %c0_i32_0 : i32, i32
  }
  func.func @transform_4(%arg0: i32) -> (i32, i32) {
    %c0_i32 = arith.constant 0 : i32
    %c0_i32_0 = arith.constant 0 : i32
    %c0_i32_1 = arith.constant 0 : i32
    return %c0_i32, %c0_i32_0 : i32, i32
  }
  func.func @transform_5(%arg0: i32) -> (i32, i32) {
    %c0_i32 = arith.constant 0 : i32
    %c0_i32_0 = arith.constant 0 : i32
    %c0_i32_1 = arith.constant 0 : i32
    return %c0_i32, %c0_i32_0 : i32, i32
  }
  func.func @transform_6(%arg0: i32) -> (i32, i32) {
    %c0_i32 = arith.constant 0 : i32
    %c0_i32_0 = arith.constant 0 : i32
    %c0_i32_1 = arith.constant 0 : i32
    return %c0_i32, %c0_i32_0 : i32, i32
  }
  func.func @transform_7(%arg0: i32) -> (i32, i32) {
    %c0_i32 = arith.constant 0 : i32
    %c0_i32_0 = arith.constant 0 : i32
    %c0_i32_1 = arith.constant 0 : i32
    return %c0_i32, %c0_i32_0 : i32, i32
  }
  func.func @transform_8(%arg0: i32) -> (i32, i32) {
    %c0_i32 = arith.constant 0 : i32
    %c0_i32_0 = arith.constant 0 : i32
    %c0_i32_1 = arith.constant 0 : i32
    return %c0_i32, %c0_i32_0 : i32, i32
  }
  func.func @transform_9(%arg0: i32) -> (i32, i32) {
    %c0_i32 = arith.constant 0 : i32
    %c0_i32_0 = arith.constant 0 : i32
    return %arg0, %c0_i32 : i32, i32
  }
}

</mosaic_0001>

<llo_original>
// kernel: tpu_custom_call.1
$region0: #{tpu_custom_call.1}
  #allocation0 [shape = 'u32[]', space=smem, size = 0x4, offset = 0x4, fixed_abs, tag = 'smem constant byte address 0x4 - core index']
  #allocation1 [shape = 'u32[144,128]{1,0:T(1,128)}', space=vmem, size = 0x12000, scoped, tag = 'internal scratch']
  %s0 = inlined_call_operand.hbm [shape: f32[8,32], index: 0, kind: input, shape index: {}]
  %s1 = inlined_call_operand.vmem [shape: f32[1,32], index: 1, kind: input, shape index: {}]
  %s2 = inlined_call_operand.vmem [shape: f32[1,32], index: 2, kind: input, shape index: {}]
  %s3 = inlined_call_operand.hbm [shape: f32[32,128], index: 3, kind: input, shape index: {}]
  %s4 = inlined_call_operand.vmem [shape: f32[1,128], index: 4, kind: input, shape index: {}]
  %s5 = inlined_call_operand.hbm [shape: f32[128,128], index: 5, kind: input, shape index: {}]
  %s6 = inlined_call_operand.vmem [shape: f32[1,128], index: 6, kind: input, shape index: {}]
  %s7 = inlined_call_operand.hbm [shape: f32[128,128], index: 7, kind: input, shape index: {}]
  %s8 = inlined_call_operand.vmem [shape: f32[1,128], index: 8, kind: input, shape index: {}]
  %s9 = inlined_call_operand.hbm [shape: f32[8,128], index: 9, kind: output, shape index: {}]
  %s10 = sld [smem:[#allocation0]]
  $region62: #{tpu_custom_call.1} parent=0
    _
  %s12 = ssub.s32 1, %s10
  %s13 = scalar_select 0, %s12, %s10
  $region1: #{tpu_custom_call.1} parent=0
    #allocation2 [shape = 'u8[4096]{0}', space=vmem, size = 0x1000, scoped, tag = 'input window, operand 0, single buffered']
    #allocation3 [shape = 's32[1]{0}', space=sflag, size = 0x4, scoped, tag = 'scoped memory for tpu_custom_call.1']
    #allocation4 [shape = 's32[1]{0}', space=sflag, size = 0x4, scoped, tag = 'scoped memory for tpu_custom_call.1']
    #allocation5 [shape = 'u8[16384]{0}', space=vmem, size = 0x4000, scoped, tag = 'input window, operand 3, single buffered']
    #allocation6 [shape = 's32[1]{0}', space=sflag, size = 0x4, scoped, tag = 'scoped memory for tpu_custom_call.1']
    #allocation7 [shape = 'u8[65536]{0}', space=vmem, size = 0x10000, scoped, tag = 'input window, operand 5, single buffered']
    #allocation8 [shape = 'u8[65536]{0}', space=vmem, size = 0x10000, scoped, tag = 'input window, operand 7, single buffered']
    #allocation9 [shape = 's32[1]{0}', space=sflag, size = 0x4, scoped, tag = 'scoped memory for tpu_custom_call.1']
    #allocation10 [shape = 'u8[4096]{0}', space=vmem, size = 0x1000, scoped, tag = 'output window, operand 0, single buffered']
    %14 = vsyncpa [#allocation3], 0
    %15 = vsyncpa [#allocation6], 0
    %16 = vsyncpa [#allocation9], 0
    %17 = vsyncpa [#allocation4], 0
    // Predicated region
    $region2: #{tpu_custom_call.1} parent=1 // pred_check
      _
    $region3: #{tpu_custom_call.1} parent=1 // pred_check_branch
      %19 = sbr.rel (0) target = $region5
    $region4: #{tpu_custom_call.1} parent=1 // pred_region
      %s21 = ssub.s32 128, 128
      %22 = vsyncadd [#allocation3], %s21
      %s24 = sshll.u32 [#allocation2], 4
      %s25 = int_to_ptr.vmem [resolvable:$true] %s24
      %27 = dma.hbm_to_vmem [thread:$0]  %s0, 128, %s25, [#allocation3]
    $region5: #{tpu_custom_call.1} parent=1 // pred_fallthru
      _
    // Predicated region
    $region6: #{tpu_custom_call.1} parent=1 // pred_check
      _
    $region7: #{tpu_custom_call.1} parent=1 // pred_check_branch
      %29 = sbr.rel (0) target = $region9
    $region8: #{tpu_custom_call.1} parent=1 // pred_region
      _
    $region9: #{tpu_custom_call.1} parent=1 // pred_fallthru
      _
    // Predicated region
    $region10: #{tpu_custom_call.1} parent=1 // pred_check
      _
    $region11: #{tpu_custom_call.1} parent=1 // pred_check_branch
      %31 = sbr.rel (0) target = $region13
    $region12: #{tpu_custom_call.1} parent=1 // pred_region
      _
    $region13: #{tpu_custom_call.1} parent=1 // pred_fallthru
      _
    // Predicated region
    $region14: #{tpu_custom_call.1} parent=1 // pred_check
      _
    $region15: #{tpu_custom_call.1} parent=1 // pred_check_branch
      %33 = sbr.rel (0) target = $region17
    $region16: #{tpu_custom_call.1} parent=1 // pred_region
      %s35 = ssub.s32 512, 512
      %36 = vsyncadd [#allocation6], %s35
      %s37 = sshll.u32 [#allocation5], 4
      %s38 = int_to_ptr.vmem [resolvable:$true] %s37
      %43 = dma.hbm_to_vmem [thread:$0]  %s3, 512, %s38, [#allocation6], 128, 128, 8
    $region17: #{tpu_custom_call.1} parent=1 // pred_fallthru
      _
    // Predicated region
    $region18: #{tpu_custom_call.1} parent=1 // pred_check
      _
    $region19: #{tpu_custom_call.1} parent=1 // pred_check_branch
      %45 = sbr.rel (0) target = $region21
    $region20: #{tpu_custom_call.1} parent=1 // pred_region
      _
    $region21: #{tpu_custom_call.1} parent=1 // pred_fallthru
      _
    // Predicated region
    $region22: #{tpu_custom_call.1} parent=1 // pred_check
      _
    $region23: #{tpu_custom_call.1} parent=1 // pred_check_branch
      %47 = sbr.rel (0) target = $region25
    $region24: #{tpu_custom_call.1} parent=1 // pred_region
      %s49 = ssub.s32 2048, 2048
      %50 = vsyncadd [#allocation6], %s49
      %s51 = sshll.u32 [#allocation7], 4
      %s52 = int_to_ptr.vmem [resolvable:$true] %s51
      %57 = dma.hbm_to_vmem [thread:$0]  %s5, 2048, %s52, [#allocation6], 128, 128, 8
    $region25: #{tpu_custom_call.1} parent=1 // pred_fallthru
      _
    // Predicated region
    $region26: #{tpu_custom_call.1} parent=1 // pred_check
      _
    $region27: #{tpu_custom_call.1} parent=1 // pred_check_branch
      %59 = sbr.rel (0) target = $region29
    $region28: #{tpu_custom_call.1} parent=1 // pred_region
      _
    $region29: #{tpu_custom_call.1} parent=1 // pred_fallthru
      _
    // Predicated region
    $region30: #{tpu_custom_call.1} parent=1 // pred_check
      _
    $region31: #{tpu_custom_call.1} parent=1 // pred_check_branch
      %61 = sbr.rel (0) target = $region33
    $region32: #{tpu_custom_call.1} parent=1 // pred_region
      %s63 = ssub.s32 2048, 2048
      %64 = vsyncadd [#allocation9], %s63
      %s65 = sshll.u32 [#allocation8], 4
      %s66 = int_to_ptr.vmem [resolvable:$true] %s65
      %71 = dma.hbm_to_vmem [thread:$0]  %s7, 2048, %s66, [#allocation9], 128, 128, 8
    $region33: #{tpu_custom_call.1} parent=1 // pred_fallthru
      _
    // Predicated region
    $region34: #{tpu_custom_call.1} parent=1 // pred_check
      _
    $region35: #{tpu_custom_call.1} parent=1 // pred_check_branch
      %73 = sbr.rel (0) target = $region37
    $region36: #{tpu_custom_call.1} parent=1 // pred_region
      _
    $region37: #{tpu_custom_call.1} parent=1 // pred_fallthru
      _
    // Predicated region
    $region38: #{tpu_custom_call.1} parent=1 // pred_check
      _
    $region39: #{tpu_custom_call.1} parent=1 // pred_check_branch
      %75 = sbr.rel (0) target = $region41
    $region40: #{tpu_custom_call.1} parent=1 // pred_region
      %76 = dma.done [#allocation3], 128
    $region41: #{tpu_custom_call.1} parent=1 // pred_fallthru
      _
    // Predicated region
    $region42: #{tpu_custom_call.1} parent=1 // pred_check
      _
    $region43: #{tpu_custom_call.1} parent=1 // pred_check_branch
      %78 = sbr.rel (0) target = $region45
    $region44: #{tpu_custom_call.1} parent=1 // pred_region
      %79 = dma.done [#allocation6], 512
    $region45: #{tpu_custom_call.1} parent=1 // pred_fallthru
      _
    // Predicated region
    $region46: #{tpu_custom_call.1} parent=1 // pred_check
      _
    $region47: #{tpu_custom_call.1} parent=1 // pred_check_branch
      %81 = sbr.rel (0) target = $region49
    $region48: #{tpu_custom_call.1} parent=1 // pred_region
      %82 = dma.done [#allocation6], 2048
    $region49: #{tpu_custom_call.1} parent=1 // pred_fallthru
      _
    // Predicated region
    $region50: #{tpu_custom_call.1} parent=1 // pred_check
      _
    $region51: #{tpu_custom_call.1} parent=1 // pred_check_branch
      %84 = sbr.rel (0) target = $region53
    $region52: #{tpu_custom_call.1} parent=1 // pred_region
      %85 = dma.done [#allocation9], 2048
    $region53: #{tpu_custom_call.1} parent=1 // pred_fallthru
      _
    %v86 = vld [vmem:[#allocation2] sm:$0xff]
    %v87 = vld [vmem:[%s1] sm:$0x1]
    %v89 = vlaneseq
    %v90 = vshrl.u32 %v89, 7
    %v91 = vsub.s32 0, %v90
    %v92 = vrot.slane %v87, %v91
    %v94 = vsub.f32 %v86, %v92
    %v95 = vadd.f32 %v94, 0.01
    %v96 = vld [vmem:[%s2] sm:$0x1]
    %v98 = vlaneseq
    %v99 = vshrl.u32 %v98, 7
    %v100 = vsub.s32 0, %v99
    %v101 = vrot.slane %v96, %v100
    %v103 = vmul.f32 %v95, %v101
    %v104 = vld [vmem:[#allocation5] sm:$0xff]
    %v105 = vld [vmem:[#allocation5 + $0x8] sm:$0xff]
    %v106 = vld [vmem:[#allocation5 + $0x10] sm:$0xff]
    %v107 = vld [vmem:[#allocation5 + $0x18] sm:$0xff]
    %v108 = vld [vmem:[%s4] sm:$0x1]
    %v110 = vlaneseq
    %v111 = vshrl.u32 %v110, 7
    %v112 = vsub.s32 0, %v111
    %v113 = vrot.slane %v108, %v112
    %vm115 = vcmask 261120
    %v117 = vsel %vm115, %v103, 0
    %119 = vmatprep.subr.mxu0 0.0
    %120 = vmatpush1.msra.mxu0 %v104
    %121 = vmatprep.subr.mxu0 0.0
    %122 = vmatpush1.msra.mxu0 %v105
    %123 = vmatprep.subr.mxu0 0.0
    %124 = vmatpush1.msra.mxu0 %v106
    %125 = vmatprep.subr.mxu0 0.0
    %126 = vmatpush1.msra.mxu0 %v107
    %127 = vmatprep.subr.mxu0 0.0
    %128 = vmatpush1.msra.mxu0 0.0
    %129 = vmatprep.subr.mxu0 0.0
    %130 = vmatpush1.msra.mxu0 0.0
    %131 = vmatprep.subr.mxu0 0.0
    %132 = vmatpush1.msra.mxu0 0.0
    %133 = vmatprep.subr.mxu0 0.0
    %134 = vmatpush1.msra.mxu0 0.0
    %135 = vmatprep.subr.mxu0 0.0
    %136 = vmatpush1.msra.mxu0 0.0
    %137 = vmatprep.subr.mxu0 0.0
    %138 = vmatpush1.msra.mxu0 0.0
    %139 = vmatprep.subr.mxu0 0.0
    %140 = vmatpush1.msra.mxu0 0.0
    %141 = vmatprep.subr.mxu0 0.0
    %142 = vmatpush1.msra.mxu0 0.0
    %143 = vmatprep.subr.mxu0 0.0
    %144 = vmatpush1.msra.mxu0 0.0
    %145 = vmatprep.subr.mxu0 0.0
    %146 = vmatpush1.msra.mxu0 0.0
    %147 = vmatprep.subr.mxu0 0.0
    %148 = vmatpush1.msra.mxu0 0.0
    %149 = vmatprep.subr.mxu0 0.0
    %150 = vmatpush1.msra.mxu0 0.0
    %151 = vmatprep.subr.mxu0 0.0
    %152 = vmatpush1.msra.mxu0 0.0
    %153 = vmatprep.subr.mxu0 0.0
    %154 = vmatpush1.msra.mxu0 0.0
    %155 = vmatprep.subr.mxu0 0.0
    %156 = vmatpush1.msra.mxu0 0.0
    %157 = vmatprep.subr.mxu0 0.0
    %158 = vmatpush1.msra.mxu0 0.0
    %159 = vmatprep.subr.mxu0 0.0
    %160 = vmatpush1.msra.mxu0 0.0
    %161 = vmatprep.subr.mxu0 0.0
    %162 = vmatpush1.msra.mxu0 0.0
    %163 = vmatprep.subr.mxu0 0.0
    %164 = vmatpush1.msra.mxu0 0.0
    %165 = vmatprep.subr.mxu0 0.0
    %166 = vmatpush1.msra.mxu0 0.0
    %167 = vmatprep.subr.mxu0 0.0
    %168 = vmatpush1.msra.mxu0 0.0
    %169 = vmatprep.subr.mxu0 0.0
    %170 = vmatpush1.msra.mxu0 0.0
    %171 = vmatprep.subr.mxu0 0.0
    %172 = vmatpush1.msra.mxu0 0.0
    %173 = vmatprep.subr.mxu0 0.0
    %174 = vmatpush1.msra.mxu0 0.0
    %175 = vmatprep.subr.mxu0 0.0
    %176 = vmatpush1.msra.mxu0 0.0
    %177 = vmatprep.subr.mxu0 0.0
    %178 = vmatpush1.msra.mxu0 0.0
    %179 = vmatprep.subr.mxu0 0.0
    %180 = vmatpush1.msra.mxu0 0.0
    %181 = vmatprep.subr.mxu0 0.0
    %182 = vmatpush1.msra.mxu0 0.0
    %183 = vmatprep.mubr.f32.mxu0 0.0
    %184 = vmatmul.mubr.f32.gmra.mrb[0].mxu0 %v117
    %v185 = vpop.f32.mrb[0].mxu0
    %v186 = vadd.f32 %v113, %v185
    %v187 = vpop.f32.mrb[0].mxu0
    %188 = vdwg.mxu0
    %v189 = vmax.f32 %v186, 0.0
    %v190 = vld [vmem:[#allocation7] sm:$0xff]
    %v191 = vld [vmem:[#allocation7 + $0x8] sm:$0xff]
    %v192 = vld [vmem:[#allocation7 + $0x10] sm:$0xff]
    %v193 = vld [vmem:[#allocation7 + $0x18] sm:$0xff]
    %v194 = vld [vmem:[#allocation7 + $0x20] sm:$0xff]
    %v195 = vld [vmem:[#allocation7 + $0x28] sm:$0xff]
    %v196 = vld [vmem:[#allocation7 + $0x30] sm:$0xff]
    %v197 = vld [vmem:[#allocation7 + $0x38] sm:$0xff]
    %v198 = vld [vmem:[#allocation7 + $0x40] sm:$0xff]
    %v199 = vld [vmem:[#allocation7 + $0x48] sm:$0xff]
    %v200 = vld [vmem:[#allocation7 + $0x50] sm:$0xff]
    %v201 = vld [vmem:[#allocation7 + $0x58] sm:$0xff]
    %v202 = vld [vmem:[#allocation7 + $0x60] sm:$0xff]
    %v203 = vld [vmem:[#allocation7 + $0x68] sm:$0xff]
    %v204 = vld [vmem:[#allocation7 + $0x70] sm:$0xff]
    %v205 = vld [vmem:[#allocation7 + $0x78] sm:$0xff]
    %v206 = vld [vmem:[%s6] sm:$0x1]
    %v208 = vlaneseq
    %v209 = vshrl.u32 %v208, 7
    %v210 = vsub.s32 0, %v209
    %v211 = vrot.slane %v206, %v210
    %213 = vmatprep.subr.mxu0 0.0
    %214 = vmatpush1.msra.mxu0 %v190
    %215 = vmatprep.subr.mxu0 0.0
    %216 = vmatpush1.msra.mxu0 %v191
    %217 = vmatprep.subr.mxu0 0.0
    %218 = vmatpush1.msra.mxu0 %v192
    %219 = vmatprep.subr.mxu0 0.0
    %220 = vmatpush1.msra.mxu0 %v193
    %221 = vmatprep.subr.mxu0 0.0
    %222 = vmatpush1.msra.mxu0 %v194
    %223 = vmatprep.subr.mxu0 0.0
    %224 = vmatpush1.msra.mxu0 %v195
    %225 = vmatprep.subr.mxu0 0.0
    %226 = vmatpush1.msra.mxu0 %v196
    %227 = vmatprep.subr.mxu0 0.0
    %228 = vmatpush1.msra.mxu0 %v197
    %229 = vmatprep.subr.mxu0 0.0
    %230 = vmatpush1.msra.mxu0 %v198
    %231 = vmatprep.subr.mxu0 0.0
    %232 = vmatpush1.msra.mxu0 %v199
    %233 = vmatprep.subr.mxu0 0.0
    %234 = vmatpush1.msra.mxu0 %v200
    %235 = vmatprep.subr.mxu0 0.0
    %236 = vmatpush1.msra.mxu0 %v201
    %237 = vmatprep.subr.mxu0 0.0
    %238 = vmatpush1.msra.mxu0 %v202
    %239 = vmatprep.subr.mxu0 0.0
    %240 = vmatpush1.msra.mxu0 %v203
    %241 = vmatprep.subr.mxu0 0.0
    %242 = vmatpush1.msra.mxu0 %v204
    %243 = vmatprep.subr.mxu0 0.0
    %244 = vmatpush1.msra.mxu0 %v205
    %245 = vmatprep.subr.mxu0 0.0
    %246 = vmatpush1.msra.mxu0 0.0
    %247 = vmatprep.subr.mxu0 0.0
    %248 = vmatpush1.msra.mxu0 0.0
    %249 = vmatprep.subr.mxu0 0.0
    %250 = vmatpush1.msra.mxu0 0.0
    %251 = vmatprep.subr.mxu0 0.0
    %252 = vmatpush1.msra.mxu0 0.0
    %253 = vmatprep.subr.mxu0 0.0
    %254 = vmatpush1.msra.mxu0 0.0
    %255 = vmatprep.subr.mxu0 0.0
    %256 = vmatpush1.msra.mxu0 0.0
    %257 = vmatprep.subr.mxu0 0.0
    %258 = vmatpush1.msra.mxu0 0.0
    %259 = vmatprep.subr.mxu0 0.0
    %260 = vmatpush1.msra.mxu0 0.0
    %261 = vmatprep.subr.mxu0 0.0
    %262 = vmatpush1.msra.mxu0 0.0
    %263 = vmatprep.subr.mxu0 0.0
    %264 = vmatpush1.msra.mxu0 0.0
    %265 = vmatprep.subr.mxu0 0.0
    %266 = vmatpush1.msra.mxu0 0.0
    %267 = vmatprep.subr.mxu0 0.0
    %268 = vmatpush1.msra.mxu0 0.0
    %269 = vmatprep.subr.mxu0 0.0
    %270 = vmatpush1.msra.mxu0 0.0
    %271 = vmatprep.subr.mxu0 0.0
    %272 = vmatpush1.msra.mxu0 0.0
    %273 = vmatprep.subr.mxu0 0.0
    %274 = vmatpush1.msra.mxu0 0.0
    %275 = vmatprep.subr.mxu0 0.0
    %276 = vmatpush1.msra.mxu0 0.0
    %277 = vmatprep.mubr.f32.mxu0 0.0
    %278 = vmatmul.mubr.f32.gmra.mrb[0].mxu0 %v189
    %v279 = vpop.f32.mrb[0].mxu0
    %v280 = vadd.f32 %v211, %v279
    %v281 = vpop.f32.mrb[0].mxu0
    %282 = vdwg.mxu0
    %v283 = vmax.f32 %v280, 0.0
    %v284 = vld [vmem:[#allocation8] sm:$0xff]
    %v285 = vld [vmem:[#allocation8 + $0x8] sm:$0xff]
    %v286 = vld [vmem:[#allocation8 + $0x10] sm:$0xff]
    %v287 = vld [vmem:[#allocation8 + $0x18] sm:$0xff]
    %v288 = vld [vmem:[#allocation8 + $0x20] sm:$0xff]
    %v289 = vld [vmem:[#allocation8 + $0x28] sm:$0xff]
    %v290 = vld [vmem:[#allocation8 + $0x30] sm:$0xff]
    %v291 = vld [vmem:[#allocation8 + $0x38] sm:$0xff]
    %v292 = vld [vmem:[#allocation8 + $0x40] sm:$0xff]
    %v293 = vld [vmem:[#allocation8 + $0x48] sm:$0xff]
    %v294 = vld [vmem:[#allocation8 + $0x50] sm:$0xff]
    %v295 = vld [vmem:[#allocation8 + $0x58] sm:$0xff]
    %v296 = vld [vmem:[#allocation8 + $0x60] sm:$0xff]
    %v297 = vld [vmem:[#allocation8 + $0x68] sm:$0xff]
    %v298 = vld [vmem:[#allocation8 + $0x70] sm:$0xff]
    %v299 = vld [vmem:[#allocation8 + $0x78] sm:$0xff]
    %v300 = vld [vmem:[%s8] sm:$0x1]
    %v302 = vlaneseq
    %v303 = vshrl.u32 %v302, 7
    %v304 = vsub.s32 0, %v303
    %v305 = vrot.slane %v300, %v304
    %307 = vmatprep.subr.mxu0 0.0
    %308 = vmatpush1.msra.mxu0 %v284
    %309 = vmatprep.subr.mxu0 0.0
    %310 = vmatpush1.msra.mxu0 %v285
    %311 = vmatprep.subr.mxu0 0.0
    %312 = vmatpush1.msra.mxu0 %v286
    %313 = vmatprep.subr.mxu0 0.0
    %314 = vmatpush1.msra.mxu0 %v287
    %315 = vmatprep.subr.mxu0 0.0
    %316 = vmatpush1.msra.mxu0 %v288
    %317 = vmatprep.subr.mxu0 0.0
    %318 = vmatpush1.msra.mxu0 %v289
    %319 = vmatprep.subr.mxu0 0.0
    %320 = vmatpush1.msra.mxu0 %v290
    %321 = vmatprep.subr.mxu0 0.0
    %322 = vmatpush1.msra.mxu0 %v291
    %323 = vmatprep.subr.mxu0 0.0
    %324 = vmatpush1.msra.mxu0 %v292
    %325 = vmatprep.subr.mxu0 0.0
    %326 = vmatpush1.msra.mxu0 %v293
    %327 = vmatprep.subr.mxu0 0.0
    %328 = vmatpush1.msra.mxu0 %v294
    %329 = vmatprep.subr.mxu0 0.0
    %330 = vmatpush1.msra.mxu0 %v295
    %331 = vmatprep.subr.mxu0 0.0
    %332 = vmatpush1.msra.mxu0 %v296
    %333 = vmatprep.subr.mxu0 0.0
    %334 = vmatpush1.msra.mxu0 %v297
    %335 = vmatprep.subr.mxu0 0.0
    %336 = vmatpush1.msra.mxu0 %v298
    %337 = vmatprep.subr.mxu0 0.0
    %338 = vmatpush1.msra.mxu0 %v299
    %339 = vmatprep.subr.mxu0 0.0
    %340 = vmatpush1.msra.mxu0 0.0
    %341 = vmatprep.subr.mxu0 0.0
    %342 = vmatpush1.msra.mxu0 0.0
    %343 = vmatprep.subr.mxu0 0.0
    %344 = vmatpush1.msra.mxu0 0.0
    %345 = vmatprep.subr.mxu0 0.0
    %346 = vmatpush1.msra.mxu0 0.0
    %347 = vmatprep.subr.mxu0 0.0
    %348 = vmatpush1.msra.mxu0 0.0
    %349 = vmatprep.subr.mxu0 0.0
    %350 = vmatpush1.msra.mxu0 0.0
    %351 = vmatprep.subr.mxu0 0.0
    %352 = vmatpush1.msra.mxu0 0.0
    %353 = vmatprep.subr.mxu0 0.0
    %354 = vmatpush1.msra.mxu0 0.0
    %355 = vmatprep.subr.mxu0 0.0
    %356 = vmatpush1.msra.mxu0 0.0
    %357 = vmatprep.subr.mxu0 0.0
    %358 = vmatpush1.msra.mxu0 0.0
    %359 = vmatprep.subr.mxu0 0.0
    %360 = vmatpush1.msra.mxu0 0.0
    %361 = vmatprep.subr.mxu0 0.0
    %362 = vmatpush1.msra.mxu0 0.0
    %363 = vmatprep.subr.mxu0 0.0
    %364 = vmatpush1.msra.mxu0 0.0
    %365 = vmatprep.subr.mxu0 0.0
    %366 = vmatpush1.msra.mxu0 0.0
    %367 = vmatprep.subr.mxu0 0.0
    %368 = vmatpush1.msra.mxu0 0.0
    %369 = vmatprep.subr.mxu0 0.0
    %370 = vmatpush1.msra.mxu0 0.0
    %371 = vmatprep.mubr.f32.mxu0 0.0
    %372 = vmatmul.mubr.f32.gmra.mrb[0].mxu0 %v283
    %v373 = vpop.f32.mrb[0].mxu0
    %v374 = vadd.f32 %v305, %v373
    %v375 = vpop.f32.mrb[0].mxu0
    %376 = vdwg.mxu0
    %v377 = vlaneseq
    %v378 = vand.u32 %v377, 127
    %vm379 = vcmp.lt.s32.totalorder %v378, 3
    %vm380 = vcmp.ge.s32.totalorder %v378, 3
    %vm381 = vcmp.lt.s32.totalorder %v378, 6
    %vm382 = vmand %vm380, %vm381
    %vm383 = vcmp.ge.s32.totalorder %v378, 6
    %vm384 = vcmp.lt.s32.totalorder %v378, 10
    %vm385 = vmand %vm383, %vm384
    %vm386 = vcmp.ge.s32.totalorder %v378, 10
    %vm387 = vcmp.lt.s32.totalorder %v378, 16
    %vm388 = vmand %vm386, %vm387
    %v389 = vmax.f32 %v374, 0.0
    %v390 = vand.u32 2147483647, %v374
    %v391 = vsub.f32 0.0, %v390
    %v392 = vmul.f32 %v391, 1.442695
    %v393 = vpow.pop %v392
    %v394 = vadd.f32 %v393, 1.0
    %v395 = vlog2.pop %v394
    %v396 = vmul.f32 %v395, 0.6931472
    %v397 = vadd.f32 %v389, %v396
    %vm398 = vcmp.lt.s32.totalorder %v378, 2
    %vm399 = vcmp.lt.s32.totalorder %v378, 5
    %vm400 = vmand %vm380, %vm399
    %vm401 = vmor %vm398, %vm400
    %vm402 = vcmp.ge.s32.totalorder %v378, 7
    %vm403 = vmand %vm402, %vm384
    %vm404 = vmor %vm401, %vm403
    %vm405 = vcmp.gt.f32.partialorder %v86, 0.5
    %v406 = vsel %vm405, 1, 0
    %v407 = vcvt.s32.f32 %v406
    %v408 = vsel %vm404, 1, 0
    %vm409 = vcmp.eq.s32.totalorder %v408, 1
    %411 = vset.pattern.permute.xlu0 31
    %412 = vperm.xlu0 %411, %v407
    %v413 = vpop.permute.xlu0 %412
    %v415 = vsel %vm409, %v413, 1.0
    %v416 = vmul.f32 %v397, %v415
    %v417 = vsel %vm379, 1, 0
    %vm418 = vcmp.eq.s32.totalorder %v417, 1
    %v419 = vsel %vm418, %v416, -inf
    %420 = vmax.xlane.f32.xlu0 %v419
    %v421 = vpop.xlane.xlu0 %420
    %v422 = vsub.f32 %v416, %v421
    %v423 = vmul.f32 %v422, 1.442695
    %v424 = vpow.pop %v423
    %v425 = vsel %vm418, %v424, 0.0
    %426 = vadd.xlane.f32.xlu0 %v425
    %v427 = vpop.xlane.xlu0 %426
    %v428 = vlog2.pop %v427
    %v429 = vmul.f32 %v428, 0.6931472
    %v430 = vsub.f32 %v422, %v429
    %v431 = vsel %vm382, 1, 0
    %vm432 = vcmp.eq.s32.totalorder %v431, 1
    %v433 = vsel %vm432, %v416, -inf
    %434 = vmax.xlane.f32.xlu0 %v433
    %v435 = vpop.xlane.xlu0 %434
    %v436 = vsub.f32 %v416, %v435
    %v437 = vmul.f32 %v436, 1.442695
    %v438 = vpow.pop %v437
    %v439 = vsel %vm432, %v438, 0.0
    %440 = vadd.xlane.f32.xlu0 %v439
    %v441 = vpop.xlane.xlu0 %440
    %v442 = vlog2.pop %v441
    %v443 = vmul.f32 %v442, 0.6931472
    %v444 = vsub.f32 %v436, %v443
    %v445 = vsel %vm385, 1, 0
    %vm446 = vcmp.eq.s32.totalorder %v445, 1
    %v447 = vsel %vm446, %v416, -inf
    %448 = vmax.xlane.f32.xlu0 %v447
    %v449 = vpop.xlane.xlu0 %448
    %v450 = vsub.f32 %v416, %v449
    %v451 = vmul.f32 %v450, 1.442695
    %v452 = vpow.pop %v451
    %v453 = vsel %vm446, %v452, 0.0
    %454 = vadd.xlane.f32.xlu0 %v453
    %v455 = vpop.xlane.xlu0 %454
    %v456 = vlog2.pop %v455
    %v457 = vmul.f32 %v456, 0.6931472
    %v458 = vsub.f32 %v450, %v457
    %vm459 = vcmp.ge.f32.partialorder %v374, 0.0
    %v460 = vsel %vm459, 1.0, %v393
    %v461 = vrcp.pop %v394
    %v462 = vmul.f32 %v460, %v461
    %464 = vset.pattern.permute.xlu0 31
    %465 = vperm.xlu0 %464, %v86
    %v466 = vpop.permute.xlu0 %465
    %v468 = vmul.f32 %v462, %v466
    %v469 = vsel %vm388, 1, 0
    %vm470 = vcmp.eq.s32.totalorder %v469, 1
    %v471 = vsel %vm470, %v468, 0.0
    %v472 = vsel %vm446, %v458, %v471
    %v473 = vsel %vm432, %v444, %v472
    %v474 = vsel %vm418, %v430, %v473
    %475 = vst [vmem:[#allocation10] sm:$0xff] %v474
    // Predicated region
    $region54: #{tpu_custom_call.1} parent=1 // pred_check
      _
    $region55: #{tpu_custom_call.1} parent=1 // pred_check_branch
      %477 = sbr.rel (0) target = $region57
    $region56: #{tpu_custom_call.1} parent=1 // pred_region
      %s479 = ssub.s32 128, 128
      %480 = vsyncadd [#allocation4], %s479
      %s482 = sshll.u32 [#allocation10], 4
      %s483 = int_to_ptr.vmem [resolvable:$true] %s482
      %485 = dma.vmem_to_hbm [thread:$0]  %s483, 128, %s9, [#allocation4]
    $region57: #{tpu_custom_call.1} parent=1 // pred_fallthru
      _
    // Predicated region
    $region58: #{tpu_custom_call.1} parent=1 // pred_check
      _
    $region59: #{tpu_custom_call.1} parent=1 // pred_check_branch
      %487 = sbr.rel (0) target = $region61
    $region60: #{tpu_custom_call.1} parent=1 // pred_region
      %488 = dma.done [#allocation4], 128
    $region61: #{tpu_custom_call.1} parent=1 // pred_fallthru
      _
    %489 = vsyncpa [#allocation3], 1
    %490 = vsyncpa [#allocation6], 1
    %491 = vsyncpa [#allocation9], 1
    %492 = vsyncpa [#allocation4], 1

</llo_original>
